<compile_context>
chip_gen: v5e
topology: v5e:2x2
jax: 0.10.0
libtpu: 0.0.40
codegen_flags: <defaults>
</compile_context>

<pallas_src>
import jax
import jax.numpy as jnp
from jax import lax
from jax.experimental import pallas as pl
from jax.experimental.pallas import tpu as pltpu


def _dot_tn(a, b):
    """a: (N, P), b: (N, Q) -> a^T @ b : (P, Q) without materializing a.T."""
    return lax.dot_general(a, b, (((0,), (0,)), ((), ())),
                           preferred_element_type=jnp.float32)


def _diffpool_kernel(x_ref, adj_ref, w_ref, bias_ref,
                     out_ref, out_adj_ref, reg_ref, xw_ref):
    b = pl.program_id(1)                    # sample index within the batch block

    # x @ W for the whole resident batch block, once per outer grid step, into
    # a VMEM scratch: one lane-dense (Bt*N, F) @ (F, C) MXU pass.
    @pl.when(b == 0)
    def _():
        bt, n, f = x_ref.shape
        c = w_ref.shape[1]
        xw_ref[...] = jnp.dot(
            x_ref[...].reshape(bt * n, f), w_ref[...],
            preferred_element_type=jnp.float32).reshape(bt, n, c)

    adj_b = adj_ref[0]                      # (N, N) — per-sample adj block
    x_b = x_ref[b]                          # (N, F)
    xw_b = xw_ref[b]                        # (N, C)

    # Assignment logits: adj @ (x W) + bias (reassociated GCN layer), then a
    # numerically stable softmax over the cluster axis.  The reciprocal runs
    # on the EUP (approx) and one Newton step restores full f32 accuracy.
    s_pre = jnp.dot(adj_b, xw_b, preferred_element_type=jnp.float32) + bias_ref[...]
    s_pre = s_pre - jnp.max(s_pre, axis=-1, keepdims=True)
    e = jnp.exp(s_pre)
    d = jnp.sum(e, axis=-1, keepdims=True)
    r = pl.reciprocal(d, approx=True)
    r = r * (2.0 - d * r)
    s = e * r                               # (N, C)

    # out = s^T x   /   out_adj = s^T (adj s)   — contract over N, no .T.
    out_ref[...] = _dot_tn(s, x_b).astype(out_ref.dtype)[None]          # (1,C,F)
    a_s = jnp.dot(adj_b, s, preferred_element_type=jnp.float32)         # (N, C)
    out_adj_ref[...] = _dot_tn(s, a_s).astype(out_adj_ref.dtype)[None]  # (1,C,C)

    # ||adj - s s^T||_F^2 via the trace identity (no (N, N) temporary):
    #   sum(adj^2) - 2 * tr(s^T adj s) + ||s^T s||_F^2,
    # with tr(s^T adj s) = sum(s * (adj s)).
    gram = _dot_tn(s, s)                                                # (C, C)
    reg_sq = (jnp.sum(adj_b * adj_b)
              - 2.0 * jnp.sum(s * a_s)
              + jnp.sum(gram * gram))
    reg_ref[...] = jnp.broadcast_to(reg_sq, reg_ref.shape)


def _default_vmem_limit():
    """Per-generation VMEM budget: 48 MiB on v7x (64 MiB/TC), 96 MiB on
    v5e/v6e (128 MiB), never below the 32 MiB scoped default floor."""
    cap = 128 * 1024 * 1024
    try:
        info = pltpu.get_tpu_info()
        cap = int(getattr(info, "vmem_capacity_bytes", cap))
    except Exception:
        pass
    return max(32 * 1024 * 1024, min(cap - 16 * 1024 * 1024, 96 * 1024 * 1024))


def _choose_bt(B, N, F, C, vmem_limit_bytes):
    """Batch-block size from the VMEM budget (f32 = 4 bytes per element)."""
    # Fixed per step: double-buffered adj + double-buffered outputs + params.
    fixed = 4 * (2 * N * N + 2 * (C * F + C * C + 1) + 2 * (F * C + C))
    # Per batch element: double-buffered x block + xw scratch.
    per_bt = 4 * N * (2 * F + C)
    headroom = 4 * 1024 * 1024
    avail = vmem_limit_bytes - headroom - fixed
    bt = max(1, min(B, avail // per_bt)) if avail > per_bt else 1
    # Keep >= 2 steps on the parallel (outer) axis so a v7x megacore can shard.
    if B >= 2:
        bt = min(bt, max(1, B // 2))
    return max(1, int(bt))


def dense_diff_pool(x, adj, w, bias, *, batch_block=None, vmem_limit_bytes=None):
    """x: (B, N, F) f32, adj: (B, N, N) f32, w: (F, C), bias: (C,)."""
    B, N, F = x.shape
    C = w.shape[1]

    if vmem_limit_bytes is None:
        vmem_limit_bytes = _default_vmem_limit()
    Bt = batch_block if batch_block is not None else _choose_bt(
        B, N, F, C, vmem_limit_bytes)
    Bt = max(1, min(int(Bt), B))

    # Pad B up to a multiple of Bt (padded samples are sliced off afterwards
    # and excluded from the regularizer sum).
    B_pad = ((B + Bt - 1) // Bt) * Bt
    if B_pad != B:
        pad = B_pad - B
        x = jnp.pad(x, ((0, pad), (0, 0), (0, 0)))
        adj = jnp.pad(adj, ((0, pad), (0, 0), (0, 0)))
    nb = B_pad // Bt

    bias2d = bias.reshape(1, C)

    out, out_adj, reg_sq = pl.pallas_call(
        _diffpool_kernel,
        out_shape=(
            jax.ShapeDtypeStruct((B_pad, C, F), jnp.float32),
            jax.ShapeDtypeStruct((B_pad, C, C), jnp.float32),
            jax.ShapeDtypeStruct((B_pad, 1, 1), jnp.float32),
        ),
        grid_spec=pltpu.PrefetchScalarGridSpec(
            num_scalar_prefetch=0,
            grid=(nb, Bt),
            in_specs=[
                # x stays resident across the inner (per-sample) axis.
                pl.BlockSpec((Bt, N, F), lambda g, b: (g, 0, 0)),
                # adj streamed one sample at a time (2*N*N*4 bytes buffered).
                pl.BlockSpec((1, N, N), lambda g, b: (g * Bt + b, 0, 0)),
                pl.BlockSpec((F, C), lambda g, b: (0, 0)),
                pl.BlockSpec((1, C), lambda g, b: (0, 0)),
            ],
            out_specs=[
                pl.BlockSpec((1, C, F), lambda g, b: (g * Bt + b, 0, 0)),
                pl.BlockSpec((1, C, C), lambda g, b: (g * Bt + b, 0, 0)),
                pl.BlockSpec((1, 1, 1), lambda g, b: (g * Bt + b, 0, 0)),
            ],
            scratch_shapes=[pltpu.VMEM((Bt, N, C), jnp.float32)],   # xw
        ),
        compiler_params=pltpu.CompilerParams(
            dimension_semantics=("parallel", "arbitrary"),
            vmem_limit_bytes=int(vmem_limit_bytes),
        ),
    )(x, adj, w, bias2d)

    out = out[:B]
    out_adj = out_adj[:B]
    # Clamp against f32 cancellation in the trace identity before the sqrt.
    reg = jnp.sqrt(jnp.maximum(jnp.sum(reg_sq[:B]), 0.0))
    # torch's `reg / reg.numel()` divides the scalar norm by 1 — a no-op.
    return out, out_adj, reg


def _reference(x, adj, w, bias):
    s = jnp.einsum("bnm,bmf,fc->bnc", adj, x, w) + bias
    s = jax.nn.softmax(s, axis=-1)
    out = jnp.einsum("bnc,bnf->bcf", s, x)
    out_adj = jnp.einsum("bnc,bnm,bmd->bcd", s, adj, s)
    diff = adj - jnp.einsum("bnc,bmc->bnm", s, s)
    reg = jnp.sqrt(jnp.sum(diff * diff))
    return out, out_adj, reg


if __name__ == "__main__":
    B, N, F, C = 2, 16, 32, 8   # batch, nodes, in_channels, clusters

    key = jax.random.PRNGKey(0)
    kx, ka, kw, kb = jax.random.split(key, 4)

    x = jax.random.normal(kx, (B, N, F), dtype=jnp.float32)
    adj_raw = jax.random.uniform(ka, (B, N, N), dtype=jnp.float32)
    adj = 0.5 * (adj_raw + jnp.transpose(adj_raw, (0, 2, 1)))  # symmetric adj

    # Deterministic "gnn_pool" parameters (dense GCN-style layer F -> C).
    w = jax.random.normal(kw, (F, C), dtype=jnp.float32) * 0.1
    bias = jax.random.normal(kb, (C,), dtype=jnp.float32) * 0.1

    out, out_adj, reg = dense_diff_pool(x, adj, w, bias)
    jax.block_until_ready((out, out_adj, reg))

    ref_out, ref_out_adj, ref_reg = _reference(x, adj, w, bias)
    assert jnp.allclose(out, ref_out, atol=1e-4, rtol=1e-4)
    assert jnp.allclose(out_adj, ref_out_adj, atol=1e-4, rtol=1e-4)
    assert jnp.allclose(reg, ref_reg, atol=1e-4, rtol=1e-4)

    print("KERNEL_OK")
</pallas_src>

<mosaic_0001>
module attributes {stable_mosaic.version = 11 : i64} {
  func.func @_diffpool_kernel(%arg0: i32, %arg1: i32, %arg2: memref<1x16x32xf32, #tpu.memory_space<vmem>>, %arg3: memref<1x16x16xf32, #tpu.memory_space<vmem>>, %arg4: memref<32x8xf32, #tpu.memory_space<vmem>>, %arg5: memref<1x8xf32, #tpu.memory_space<vmem>>, %arg6: memref<1x8x32xf32, #tpu.memory_space<vmem>>, %arg7: memref<1x8x8xf32, #tpu.memory_space<vmem>>, %arg8: memref<1x1x1xf32, #tpu.memory_space<vmem>>, %arg9: memref<1x16x8xf32, #tpu.memory_space<vmem>>) attributes {dimension_semantics = [#tpu.dimension_semantics<parallel>, #tpu.dimension_semantics<arbitrary>], iteration_bounds = array<i64: 2, 1>, scalar_prefetch = 0 : i64, scratch_operands = 1 : i64, tpu.core_type = #tpu.core_type<tc>, window_params = [{transform_indices = @transform_0, window_bounds = array<i64: 1, 16, 32>}, {transform_indices = @transform_1, window_bounds = array<i64: 1, 16, 16>}, {pipeline_mode = #tpu.pipeline_mode<synchronous>, transform_indices = @transform_2, window_bounds = array<i64: 32, 8>}, {pipeline_mode = #tpu.pipeline_mode<synchronous>, transform_indices = @transform_3, window_bounds = array<i64: 1, 8>}, {transform_indices = @transform_4, window_bounds = array<i64: 1, 8, 32>}, {transform_indices = @transform_5, window_bounds = array<i64: 1, 8, 8>}, {transform_indices = @transform_6, window_bounds = array<i64: 1, 1, 1>}]} {
    %c0_i32 = arith.constant 0 : i32
    %0 = arith.cmpi eq, %arg1, %c0_i32 : i32
    %1 = arith.extui %0 : i1 to i32
    %c0_i32_0 = arith.constant 0 : i32
    %2 = arith.cmpi ne, %1, %c0_i32_0 : i32
    scf.if %2 {
      %c0_29 = arith.constant 0 : index
      %c0_30 = arith.constant 0 : index
      %c0_31 = arith.constant 0 : index
      %57 = vector.load %arg2[%c0_29, %c0_30, %c0_31] : memref<1x16x32xf32, #tpu.memory_space<vmem>>, vector<1x16x32xf32>
      %58 = vector.shape_cast %57 : vector<1x16x32xf32> to vector<16x32xf32>
      %c0_32 = arith.constant 0 : index
      %c0_33 = arith.constant 0 : index
      %59 = vector.load %arg4[%c0_32, %c0_33] : memref<32x8xf32, #tpu.memory_space<vmem>>, vector<32x8xf32>
      %cst_34 = arith.constant dense<0.000000e+00> : vector<16x8xf32>
      %60 = tpu.matmul %58, %59, %cst_34 {dimension_numbers = #tpu.dot_dimension_numbers<[1], [0], [0], [1], [0, 0, 1, 1], [], []>} : vector<16x32xf32>, vector<32x8xf32>, vector<16x8xf32> -> vector<16x8xf32>
      %61 = vector.shape_cast %60 : vector<16x8xf32> to vector<1x16x8xf32>
      %c0_35 = arith.constant 0 : index
      %c0_36 = arith.constant 0 : index
      %c0_37 = arith.constant 0 : index
      %62 = vector.load %arg9[%c0_35, %c0_36, %c0_37] : memref<1x16x8xf32, #tpu.memory_space<vmem>>, vector<1x16x8xf32>
      tpu.vector_store %arg9[%c0_35, %c0_36, %c0_37], %61 {strides = array<i32>} : memref<1x16x8xf32, #tpu.memory_space<vmem>>, vector<1x16x8xf32>,
    } else {
    }
    %c0 = arith.constant 0 : index
    %c0_1 = arith.constant 0 : index
    %c0_2 = arith.constant 0 : index
    %3 = vector.load %arg3[%c0, %c0_1, %c0_2] : memref<1x16x16xf32, #tpu.memory_space<vmem>>, vector<1x16x16xf32>
    %4 = vector.shape_cast %3 : vector<1x16x16xf32> to vector<16x16xf32>
    %5 = arith.index_cast %arg1 : i32 to index
    %c0_3 = arith.constant 0 : index
    %c0_4 = arith.constant 0 : index
    %6 = vector.load %arg2[%5, %c0_3, %c0_4] : memref<1x16x32xf32, #tpu.memory_space<vmem>>, vector<1x16x32xf32>
    %7 = vector.shape_cast %6 : vector<1x16x32xf32> to vector<16x32xf32>
    %8 = arith.index_cast %arg1 : i32 to index
    %c0_5 = arith.constant 0 : index
    %c0_6 = arith.constant 0 : index
    %9 = vector.load %arg9[%8, %c0_5, %c0_6] : memref<1x16x8xf32, #tpu.memory_space<vmem>>, vector<1x16x8xf32>
    %10 = vector.shape_cast %9 : vector<1x16x8xf32> to vector<16x8xf32>
    %cst = arith.constant dense<0.000000e+00> : vector<16x8xf32>
    %11 = tpu.matmul %4, %10, %cst {dimension_numbers = #tpu.dot_dimension_numbers<[1], [0], [0], [1], [0, 0, 1, 1], [], []>} : vector<16x16xf32>, vector<16x8xf32>, vector<16x8xf32> -> vector<16x8xf32>
    %c0_7 = arith.constant 0 : index
    %c0_8 = arith.constant 0 : index
    %12 = vector.load %arg5[%c0_7, %c0_8] : memref<1x8xf32, #tpu.memory_space<vmem>>, vector<1x8xf32>
    %13 = vector.broadcast %12 : vector<1x8xf32> to vector<16x8xf32>
    %14 = arith.addf %11, %13 : vector<16x8xf32>
    %cst_9 = arith.constant dense<0xFF800000> : vector<16xf32>
    %15 = vector.multi_reduction <maximumf>, %14, %cst_9 [1] : vector<16x8xf32> to vector<16xf32>
    %16 = vector.shape_cast %15 : vector<16xf32> to vector<16x1xf32>
    %17 = vector.broadcast %16 : vector<16x1xf32> to vector<16x8xf32>
    %18 = arith.subf %14, %17 : vector<16x8xf32>
    %19 = math.exp %18 : vector<16x8xf32>
    %cst_10 = arith.constant dense<0.000000e+00> : vector<16xf32>
    %20 = vector.multi_reduction <add>, %19, %cst_10 [1] : vector<16x8xf32> to vector<16xf32>
    %21 = vector.shape_cast %20 : vector<16xf32> to vector<16x1xf32>
    %22 = tpu.reciprocal %21 {approx = true} : vector<16x1xf32> -> vector<16x1xf32>
    %23 = arith.mulf %21, %22 : vector<16x1xf32>
    %cst_11 = arith.constant 2.000000e+00 : f32
    %24 = vector.broadcast %cst_11 : f32 to vector<16x1xf32>
    %25 = arith.subf %24, %23 : vector<16x1xf32>
    %26 = arith.mulf %22, %25 : vector<16x1xf32>
    %27 = vector.broadcast %26 : vector<16x1xf32> to vector<16x8xf32>
    %28 = arith.mulf %19, %27 : vector<16x8xf32>
    %cst_12 = arith.constant dense<0.000000e+00> : vector<8x32xf32>
    %29 = tpu.matmul %28, %7, %cst_12 {dimension_numbers = #tpu.dot_dimension_numbers<[0], [0], [1], [1], [0, 1, 1, 1], [], []>} : vector<16x8xf32>, vector<16x32xf32>, vector<8x32xf32> -> vector<8x32xf32>
    %30 = vector.shape_cast %29 : vector<8x32xf32> to vector<1x8x32xf32>
    %c0_13 = arith.constant 0 : index
    %c0_14 = arith.constant 0 : index
    %c0_15 = arith.constant 0 : index
    %31 = vector.load %arg6[%c0_13, %c0_14, %c0_15] : memref<1x8x32xf32, #tpu.memory_space<vmem>>, vector<1x8x32xf32>
    tpu.vector_store %arg6[%c0_13, %c0_14, %c0_15], %30 {strides = array<i32>} : memref<1x8x32xf32, #tpu.memory_space<vmem>>, vector<1x8x32xf32>,
    %cst_16 = arith.constant dense<0.000000e+00> : vector<16x8xf32>
    %32 = tpu.matmul %4, %28, %cst_16 {dimension_numbers = #tpu.dot_dimension_numbers<[1], [0], [0], [1], [0, 0, 1, 1], [], []>} : vector<16x16xf32>, vector<16x8xf32>, vector<16x8xf32> -> vector<16x8xf32>
    %cst_17 = arith.constant dense<0.000000e+00> : vector<8x8xf32>
    %33 = tpu.matmul %28, %32, %cst_17 {dimension_numbers = #tpu.dot_dimension_numbers<[0], [0], [1], [1], [0, 1, 1, 1], [], []>} : vector<16x8xf32>, vector<16x8xf32>, vector<8x8xf32> -> vector<8x8xf32>
    %34 = vector.shape_cast %33 : vector<8x8xf32> to vector<1x8x8xf32>
    %c0_18 = arith.constant 0 : index
    %c0_19 = arith.constant 0 : index
    %c0_20 = arith.constant 0 : index
    %35 = vector.load %arg7[%c0_18, %c0_19, %c0_20] : memref<1x8x8xf32, #tpu.memory_space<vmem>>, vector<1x8x8xf32>
    tpu.vector_store %arg7[%c0_18, %c0_19, %c0_20], %34 {strides = array<i32>} : memref<1x8x8xf32, #tpu.memory_space<vmem>>, vector<1x8x8xf32>,
    %cst_21 = arith.constant dense<0.000000e+00> : vector<8x8xf32>
    %36 = tpu.matmul %28, %28, %cst_21 {dimension_numbers = #tpu.dot_dimension_numbers<[0], [0], [1], [1], [0, 1, 1, 1], [], []>} : vector<16x8xf32>, vector<16x8xf32>, vector<8x8xf32> -> vector<8x8xf32>
    %37 = arith.mulf %4, %4 : vector<16x16xf32>
    %38 = vector.shape_cast %37 : vector<16x16xf32> to vector<1x16x16xf32>
    %cst_22 = arith.constant dense<0.000000e+00> : vector<1xf32>
    %39 = vector.multi_reduction <add>, %38, %cst_22 [1, 2] : vector<1x16x16xf32> to vector<1xf32>
    %40 = vector.shape_cast %39 : vector<1xf32> to vector<1x1x1xf32>
    %41 = vector.extract %40[0, 0, 0] : f32 from vector<1x1x1xf32>
    %42 = arith.mulf %28, %32 : vector<16x8xf32>
    %43 = vector.shape_cast %42 : vector<16x8xf32> to vector<1x16x8xf32>
    %cst_23 = arith.constant dense<0.000000e+00> : vector<1xf32>
    %44 = vector.multi_reduction <add>, %43, %cst_23 [1, 2] : vector<1x16x8xf32> to vector<1xf32>
    %45 = vector.shape_cast %44 : vector<1xf32> to vector<1x1x1xf32>
    %46 = vector.extract %45[0, 0, 0] : f32 from vector<1x1x1xf32>
    %cst_24 = arith.constant 2.000000e+00 : f32
    %47 = arith.mulf %cst_24, %46 : f32
    %48 = arith.subf %41, %47 : f32
    %49 = arith.mulf %36, %36 : vector<8x8xf32>
    %50 = vector.shape_cast %49 : vector<8x8xf32> to vector<1x8x8xf32>
    %cst_25 = arith.constant dense<0.000000e+00> : vector<1xf32>
    %51 = vector.multi_reduction <add>, %50, %cst_25 [1, 2] : vector<1x8x8xf32> to vector<1xf32>
    %52 = vector.shape_cast %51 : vector<1xf32> to vector<1x1x1xf32>
    %53 = vector.extract %52[0, 0, 0] : f32 from vector<1x1x1xf32>
    %54 = arith.addf %48, %53 : f32
    %55 = vector.broadcast %54 : f32 to vector<1x1x1xf32>
    %c0_26 = arith.constant 0 : index
    %c0_27 = arith.constant 0 : index
    %c0_28 = arith.constant 0 : index
    %56 = vector.load %arg8[%c0_26, %c0_27, %c0_28] : memref<1x1x1xf32, #tpu.memory_space<vmem>>, vector<1x1x1xf32>
    tpu.vector_store %arg8[%c0_26, %c0_27, %c0_28], %55 {strides = array<i32>} : memref<1x1x1xf32, #tpu.memory_space<vmem>>, vector<1x1x1xf32>,
    return
  }
  func.func @transform_0(%arg0: i32, %arg1: i32) -> (i32, i32, i32) {
    %c0_i32 = arith.constant 0 : i32
    %c0_i32_0 = arith.constant 0 : i32
    %c0_i32_1 = arith.constant 0 : i32
    return %arg0, %c0_i32, %c0_i32_0 : i32, i32, i32
  }
  func.func @transform_1(%arg0: i32, %arg1: i32) -> (i32, i32, i32) {
    %c1_i32 = arith.constant 1 : i32
    %0 = arith.muli %arg0, %c1_i32 : i32
    %1 = arith.addi %0, %arg1 : i32
    %c0_i32 = arith.constant 0 : i32
    %c0_i32_0 = arith.constant 0 : i32
    %c0_i32_1 = arith.constant 0 : i32
    return %1, %c0_i32, %c0_i32_0 : i32, i32, i32
  }
  func.func @transform_2(%arg0: i32, %arg1: i32) -> (i32, i32) {
    %c0_i32 = arith.constant 0 : i32
    %c0_i32_0 = arith.constant 0 : i32
    %c0_i32_1 = arith.constant 0 : i32
    return %c0_i32, %c0_i32_0 : i32, i32
  }
  func.func @transform_3(%arg0: i32, %arg1: i32) -> (i32, i32) {
    %c0_i32 = arith.constant 0 : i32
    %c0_i32_0 = arith.constant 0 : i32
    %c0_i32_1 = arith.constant 0 : i32
    return %c0_i32, %c0_i32_0 : i32, i32
  }
  func.func @transform_4(%arg0: i32, %arg1: i32) -> (i32, i32, i32) {
    %c1_i32 = arith.constant 1 : i32
    %0 = arith.muli %arg0, %c1_i32 : i32
    %1 = arith.addi %0, %arg1 : i32
    %c0_i32 = arith.constant 0 : i32
    %c0_i32_0 = arith.constant 0 : i32
    %c0_i32_1 = arith.constant 0 : i32
    return %1, %c0_i32, %c0_i32_0 : i32, i32, i32
  }
  func.func @transform_5(%arg0: i32, %arg1: i32) -> (i32, i32, i32) {
    %c1_i32 = arith.constant 1 : i32
    %0 = arith.muli %arg0, %c1_i32 : i32
    %1 = arith.addi %0, %arg1 : i32
    %c0_i32 = arith.constant 0 : i32
    %c0_i32_0 = arith.constant 0 : i32
    %c0_i32_1 = arith.constant 0 : i32
    return %1, %c0_i32, %c0_i32_0 : i32, i32, i32
  }
  func.func @transform_6(%arg0: i32, %arg1: i32) -> (i32, i32, i32) {
    %c1_i32 = arith.constant 1 : i32
    %0 = arith.muli %arg0, %c1_i32 : i32
    %1 = arith.addi %0, %arg1 : i32
    %c0_i32 = arith.constant 0 : i32
    %c0_i32_0 = arith.constant 0 : i32
    %c0_i32_1 = arith.constant 0 : i32
    return %1, %c0_i32, %c0_i32_0 : i32, i32, i32
  }
}

</mosaic_0001>

<llo_original>
// kernel: tpu_custom_call.1
$region0: #{tpu_custom_call.1}
  #allocation0 [shape = 'u32[]', space=smem, size = 0x4, offset = 0x4, fixed_abs, tag = 'smem constant byte address 0x4 - core index']
  #allocation1 [shape = 'u32[72,128]{1,0:T(1,128)}', space=vmem, size = 0x9000, scoped, tag = 'internal scratch']
  #allocation2 [shape = 'f32[1,16,8]{2,1,0:T(8,128)}', space=vmem, size = 0x2000, scoped, tag = 'scratch operand']
  %s0 = inlined_call_operand.vmem [shape: f32[2,16,32], index: 0, kind: input, shape index: {}]
  %s1 = inlined_call_operand.hbm [shape: f32[2,16,16], index: 1, kind: input, shape index: {}]
  %s2 = inlined_call_operand.vmem [shape: f32[32,8], index: 2, kind: input, shape index: {}]
  %s3 = inlined_call_operand.vmem [shape: f32[1,8], index: 3, kind: input, shape index: {}]
  %s4 = inlined_call_operand.hbm [shape: f32[2,8,32], index: 4, kind: output, shape index: {0}]
  %s5 = inlined_call_operand.hbm [shape: f32[2,8,8], index: 5, kind: output, shape index: {1}]
  %s6 = inlined_call_operand.vmem [shape: f32[2,1,1], index: 6, kind: output, shape index: {2}]
  %7 = xla_tuple %s4, %s5, %s6
  %s8 = sld [smem:[#allocation0]]
  $region73: #{tpu_custom_call.1} parent=0
    _
  %s10 = ssub.s32 1, %s8
  %s11 = scalar_select 0, %s10, %s8
  $region1: #{tpu_custom_call.1} parent=0
    #allocation3 [shape = 'u8[16384]{0}', space=vmem, size = 0x4000, scoped, tag = 'input window, operand 1']
    #allocation4 [shape = 's32[2]{0}', space=sflag, size = 0x8, scoped, tag = 'scoped memory for tpu_custom_call.1']
    #allocation5 [shape = 's32[2]{0}', space=sflag, size = 0x8, scoped, tag = 'scoped memory for tpu_custom_call.1']
    #allocation6 [shape = 'u8[8192]{0}', space=vmem, size = 0x2000, scoped, tag = 'output window, operand 0']
    #allocation7 [shape = 'u8[8192]{0}', space=vmem, size = 0x2000, scoped, tag = 'output window, operand 1']
    #allocation8 [shape = 's32[2]{0}', space=sflag, size = 0x8, scoped, tag = 'scoped memory for tpu_custom_call.1']
    %12 = vsyncpa [#allocation4], 0
    %s13 = scalar_lea.sflag [#allocation4], 1
    %14 = vsyncpa %s13, 0
    %15 = vsyncpa [#allocation5], 0
    %s16 = scalar_lea.sflag [#allocation5], 1
    %17 = vsyncpa %s16, 0
    %18 = vsyncpa [#allocation8], 0
    %s19 = scalar_lea.sflag [#allocation8], 1
    %20 = vsyncpa %s19, 0
    loop: start=0, step=1, limit=4
    $region2: #{tpu_custom_call.1} parent=1 // loop_pre_header
      _
    $region3: #{tpu_custom_call.1} parent=1 // loop_header
      %s22 = sphi 0, %s26
      %p23 = scmp.ge.s32.totalorder %s22, 4
      %s29 = sphi 0, %s41
      %s30 = sphi 0, %s37
      %s31 = sphi 0, %s29
      %s32 = sphi 0, %s30
      %s33 = sphi 0, %s31
      %s34 = sphi 0, %s32
      %s44 = sphi 0, %s46
      %s47 = sphi 0, %s44
      %s48 = sphi 0, %s47
      %s64 = sphi 0, %s48
      %s72 = sphi 0, %s74
      %s75 = sphi 0, %s72
      %s76 = sphi 0, %s75
      %s92 = sphi 0, %s76
      %s96 = sphi 0, %s96
      %s98 = sphi 0, %s96
      %s99 = sphi 0, %s98
      %s113 = sphi 0, %s99
      %s117 = sphi 0, %s117
      %s119 = sphi 0, %s117
      %s120 = sphi 0, %s119
      %s134 = sphi 0, %s120
      %s142 = sphi 0, %s144
      %s145 = sphi 0, %s142
      %s146 = sphi 0, %s145
      %s162 = sphi 0, %s146
      %s170 = sphi 0, %s172
      %s173 = sphi 0, %s170
      %s174 = sphi 0, %s173
      %s190 = sphi 0, %s174
      %s198 = sphi 0, %s200
      %s201 = sphi 0, %s198
      %s202 = sphi 0, %s201
      %s218 = sphi 0, %s202
    $region4: #{tpu_custom_call.1} parent=1 // loop_header_branch
      %25 = sbr.rel (%p23) target = $region8
    $region5: #{tpu_custom_call.1} parent=1 // loop_body
      %s27 = ssub.s32 %s22, 1
      %s28 = ssub.s32 %s22, 2
      %s35 = sadd.s32 1, %s30
      %p36 = scmp.ge.s32.totalorder %s35, 1
      %s37 = scalar_select %p36, 0, %s35
      %s38 = sadd.s32 1, %s29
      %s39 = scalar_select %p36, %s38, %s29
      %p40 = scmp.ge.s32.totalorder %s39, 2
      %s41 = scalar_select %p40, 0, %s39
      %s42 = ssub.s32 %s29, %s41
      %p43 = scmp.eq.s32.totalorder %s42, 0
      %s45 = sadd.s32 %s44, 1
      %s46 = scalar_select %p43, %s44, %s45
      %p49 = pneg %p43
      %p50 = scmp.eq.s32.totalorder %s22, 1
      %p51 = por %p49, %p50
      %p52 = scmp.ne.s32.totalorder %s44, %s47
      %p53 = scmp.eq.s32.totalorder %s22, 0
      %p54 = por %p52, %p53
      %p55 = scmp.ne.s32.totalorder %s44, %s47
      %p56 = scmp.eq.s32.totalorder %s27, 1
      %p57 = por %p55, %p56
      %p58 = scmp.ne.s32.totalorder %s47, %s48
      %p59 = scmp.eq.s32.totalorder %s27, 0
      %p60 = por %p58, %p59
      %p61 = scmp.ne.s32.totalorder %s47, %s48
      %p62 = scmp.eq.s32.totalorder %s28, 1
      %p63 = por %p61, %p62
      %p65 = scmp.ne.s32.totalorder %s48, %s64
      %p66 = scmp.eq.s32.totalorder %s28, 0
      %p67 = por %p65, %p66
      %s68 = sadd.s32 %s29, %s30
      %s69 = sadd.s32 %s41, %s37
      %s70 = ssub.s32 %s68, %s69
      %p71 = scmp.eq.s32.totalorder %s70, 0
      %s73 = sadd.s32 %s72, 1
      %s74 = scalar_select %p71, %s72, %s73
      %p77 = pneg %p71
      %p78 = scmp.eq.s32.totalorder %s22, 1
      %p79 = por %p77, %p78
      %p80 = scmp.ne.s32.totalorder %s72, %s75
      %p81 = scmp.eq.s32.totalorder %s22, 0
      %p82 = por %p80, %p81
      %p83 = scmp.ne.s32.totalorder %s72, %s75
      %p84 = scmp.eq.s32.totalorder %s27, 1
      %p85 = por %p83, %p84
      %p86 = scmp.ne.s32.totalorder %s75, %s76
      %p87 = scmp.eq.s32.totalorder %s27, 0
      %p88 = por %p86, %p87
      %p89 = scmp.ne.s32.totalorder %s75, %s76
      %p90 = scmp.eq.s32.totalorder %s28, 1
      %p91 = por %p89, %p90
      %p93 = scmp.ne.s32.totalorder %s76, %s92
      %p94 = scmp.eq.s32.totalorder %s28, 0
      %p95 = por %p93, %p94
      %s97 = sadd.s32 %s96, 1
      %p100 = scmp.eq.s32.totalorder %s22, 1
      %p101 = scmp.ne.s32.totalorder %s96, %s98
      %p102 = scmp.eq.s32.totalorder %s22, 0
      %p103 = por %p101, %p102
      %p104 = scmp.ne.s32.totalorder %s96, %s98
      %p105 = scmp.eq.s32.totalorder %s27, 1
      %p106 = por %p104, %p105
      %p107 = scmp.ne.s32.totalorder %s98, %s99
      %p108 = scmp.eq.s32.totalorder %s27, 0
      %p109 = por %p107, %p108
      %p110 = scmp.ne.s32.totalorder %s98, %s99
      %p111 = scmp.eq.s32.totalorder %s28, 1
      %p112 = por %p110, %p111
      %p114 = scmp.ne.s32.totalorder %s99, %s113
      %p115 = scmp.eq.s32.totalorder %s28, 0
      %p116 = por %p114, %p115
      %s118 = sadd.s32 %s117, 1
      %p121 = scmp.eq.s32.totalorder %s22, 1
      %p122 = scmp.ne.s32.totalorder %s117, %s119
      %p123 = scmp.eq.s32.totalorder %s22, 0
      %p124 = por %p122, %p123
      %p125 = scmp.ne.s32.totalorder %s117, %s119
      %p126 = scmp.eq.s32.totalorder %s27, 1
      %p127 = por %p125, %p126
      %p128 = scmp.ne.s32.totalorder %s119, %s120
      %p129 = scmp.eq.s32.totalorder %s27, 0
      %p130 = por %p128, %p129
      %p131 = scmp.ne.s32.totalorder %s119, %s120
      %p132 = scmp.eq.s32.totalorder %s28, 1
      %p133 = por %p131, %p132
      %p135 = scmp.ne.s32.totalorder %s120, %s134
      %p136 = scmp.eq.s32.totalorder %s28, 0
      %p137 = por %p135, %p136
      %s138 = sadd.s32 %s29, %s30
      %s139 = sadd.s32 %s41, %s37
      %s140 = ssub.s32 %s138, %s139
      %p141 = scmp.eq.s32.totalorder %s140, 0
      %s143 = sadd.s32 %s142, 1
      %s144 = scalar_select %p141, %s142, %s143
      %p147 = pneg %p141
      %p148 = scmp.eq.s32.totalorder %s22, 1
      %p149 = por %p147, %p148
      %p150 = scmp.ne.s32.totalorder %s142, %s145
      %p151 = scmp.eq.s32.totalorder %s22, 0
      %p152 = por %p150, %p151
      %p153 = scmp.ne.s32.totalorder %s142, %s145
      %p154 = scmp.eq.s32.totalorder %s27, 1
      %p155 = por %p153, %p154
      %p156 = scmp.ne.s32.totalorder %s145, %s146
      %p157 = scmp.eq.s32.totalorder %s27, 0
      %p158 = por %p156, %p157
      %p159 = scmp.ne.s32.totalorder %s145, %s146
      %p160 = scmp.eq.s32.totalorder %s28, 1
      %p161 = por %p159, %p160
      %p163 = scmp.ne.s32.totalorder %s146, %s162
      %p164 = scmp.eq.s32.totalorder %s28, 0
      %p165 = por %p163, %p164
      %s166 = sadd.s32 %s29, %s30
      %s167 = sadd.s32 %s41, %s37
      %s168 = ssub.s32 %s166, %s167
      %p169 = scmp.eq.s32.totalorder %s168, 0
      %s171 = sadd.s32 %s170, 1
      %s172 = scalar_select %p169, %s170, %s171
      %p175 = pneg %p169
      %p176 = scmp.eq.s32.totalorder %s22, 1
      %p177 = por %p175, %p176
      %p178 = scmp.ne.s32.totalorder %s170, %s173
      %p179 = scmp.eq.s32.totalorder %s22, 0
      %p180 = por %p178, %p179
      %p181 = scmp.ne.s32.totalorder %s170, %s173
      %p182 = scmp.eq.s32.totalorder %s27, 1
      %p183 = por %p181, %p182
      %p184 = scmp.ne.s32.totalorder %s173, %s174
      %p185 = scmp.eq.s32.totalorder %s27, 0
      %p186 = por %p184, %p185
      %p187 = scmp.ne.s32.totalorder %s173, %s174
      %p188 = scmp.eq.s32.totalorder %s28, 1
      %p189 = por %p187, %p188
      %p191 = scmp.ne.s32.totalorder %s174, %s190
      %p192 = scmp.eq.s32.totalorder %s28, 0
      %p193 = por %p191, %p192
      %s194 = sadd.s32 %s29, %s30
      %s195 = sadd.s32 %s41, %s37
      %s196 = ssub.s32 %s194, %s195
      %p197 = scmp.eq.s32.totalorder %s196, 0
      %s199 = sadd.s32 %s198, 1
      %s200 = scalar_select %p197, %s198, %s199
      %p203 = pneg %p197
      %p204 = scmp.eq.s32.totalorder %s22, 1
      %p205 = por %p203, %p204
      %p206 = scmp.ne.s32.totalorder %s198, %s201
      %p207 = scmp.eq.s32.totalorder %s22, 0
      %p208 = por %p206, %p207
      %p209 = scmp.ne.s32.totalorder %s198, %s201
      %p210 = scmp.eq.s32.totalorder %s27, 1
      %p211 = por %p209, %p210
      %p212 = scmp.ne.s32.totalorder %s201, %s202
      %p213 = scmp.eq.s32.totalorder %s27, 0
      %p214 = por %p212, %p213
      %p215 = scmp.ne.s32.totalorder %s201, %s202
      %p216 = scmp.eq.s32.totalorder %s28, 1
      %p217 = por %p215, %p216
      %p219 = scmp.ne.s32.totalorder %s202, %s218
      %p220 = scmp.eq.s32.totalorder %s28, 0
      %p221 = por %p219, %p220
      %p222 = scmp.le.s32.totalorder 1, %s22
      %p223 = scmp.lt.s32.totalorder %s22, 3
      %p224 = pnand %p222, %p223
      %p225 = pneg %p224
      // Predicated region
      $region9: #{tpu_custom_call.1} parent=5 // pred_check
        _
      $region10: #{tpu_custom_call.1} parent=5 // pred_check_branch
        %227 = sbr.rel (%p224) target = $region12
      $region11: #{tpu_custom_call.1} parent=5 // pred_region
        %s228 = ssub.s32 %s22, 1
        // Predicated region
        $region13: #{tpu_custom_call.1} parent=11 // pred_check
          %p229 = pneg %p109
        $region14: #{tpu_custom_call.1} parent=11 // pred_check_branch
          %231 = sbr.rel (%p229) target = $region16
        $region15: #{tpu_custom_call.1} parent=11 // pred_region
          _
        $region16: #{tpu_custom_call.1} parent=11 // pred_fallthru
          _
        // Predicated region
        $region17: #{tpu_custom_call.1} parent=11 // pred_check
          %p232 = pneg %p130
        $region18: #{tpu_custom_call.1} parent=11 // pred_check_branch
          %234 = sbr.rel (%p232) target = $region20
        $region19: #{tpu_custom_call.1} parent=11 // pred_region
          _
        $region20: #{tpu_custom_call.1} parent=11 // pred_fallthru
          _
      $region12: #{tpu_custom_call.1} parent=5 // pred_fallthru
        _
      %p235 = scmp.lt.s32.totalorder %s22, 2
      // Predicated region
      $region21: #{tpu_custom_call.1} parent=5 // pred_check
        %p236 = pneg %p235
      $region22: #{tpu_custom_call.1} parent=5 // pred_check_branch
        %238 = sbr.rel (%p236) target = $region24
      $region23: #{tpu_custom_call.1} parent=5 // pred_region
        // Predicated region
        $region25: #{tpu_custom_call.1} parent=23 // pred_check
          %p239 = pneg %p54
        $region26: #{tpu_custom_call.1} parent=23 // pred_check_branch
          %241 = sbr.rel (%p239) target = $region28
        $region27: #{tpu_custom_call.1} parent=23 // pred_region
          %p242 = scmp.lt.s32.totalorder %s29, 1
          %s243 = scalar_select %p242, %s29, 1
          %s244 = smul.addr %s243, 2
          %s245 = smul.addr %s244, 8
          %s246 = scalar_lea.vmem %s0, %s245
        $region28: #{tpu_custom_call.1} parent=23 // pred_fallthru
          _
        // Predicated region
        $region29: #{tpu_custom_call.1} parent=23 // pred_check
          %p247 = pneg %p82
        $region30: #{tpu_custom_call.1} parent=23 // pred_check_branch
          %249 = sbr.rel (%p247) target = $region32
        $region31: #{tpu_custom_call.1} parent=23 // pred_region
          %s250 = sand.u32 %s72, 1
          %s251 = scalar_lea.sflag [#allocation4], %s250
          %s252 = sand.u32 %s72, 1
          %s253 = smul.addr %s252, 16
          %s254 = scalar_lea.vmem [#allocation3], %s253
          %s255 = sadd.s32 %s29, %s30
          %257 = vsyncadd %s251, 0
          %s258 = smul.addr %s255, 2
          %s259 = smul.addr %s258, 8
          %s260 = scalar_lea.hbm %s1, %s259
          %s261 = sshll.u32 %s260, 4
          %s262 = int_to_ptr.hbm [resolvable:$true] %s261
          %s263 = sshll.u32 %s254, 4
          %s264 = int_to_ptr.vmem [resolvable:$true] %s263
          %269 = dma.hbm_to_vmem [thread:$0]  %s262, 256, %s264, %s251, 128, 128, 8
        $region32: #{tpu_custom_call.1} parent=23 // pred_fallthru
          _
      $region24: #{tpu_custom_call.1} parent=5 // pred_fallthru
        _
      %p270 = scmp.le.s32.totalorder 1, %s22
      %p271 = scmp.lt.s32.totalorder %s22, 3
      %p272 = pnand %p270, %p271
      %p273 = pneg %p272
      // Predicated region
      $region33: #{tpu_custom_call.1} parent=5 // pred_check
        _
      $region34: #{tpu_custom_call.1} parent=5 // pred_check_branch
        %275 = sbr.rel (%p272) target = $region36
      $region35: #{tpu_custom_call.1} parent=5 // pred_region
        %s276 = ssub.s32 %s22, 1
        %s277 = sand.u32 %s75, 1
        %s278 = scalar_lea.sflag [#allocation4], %s277
        %s279 = sand.u32 %s75, 1
        %s280 = smul.addr %s279, 16
        %s281 = scalar_lea.vmem [#allocation3], %s280
        // Predicated region
        $region37: #{tpu_custom_call.1} parent=35 // pred_check
          %p282 = pneg %p88
        $region38: #{tpu_custom_call.1} parent=35 // pred_check_branch
          %284 = sbr.rel (%p282) target = $region40
        $region39: #{tpu_custom_call.1} parent=35 // pred_region
          %286 = dma.done %s278, 256
        $region40: #{tpu_custom_call.1} parent=35 // pred_fallthru
          _
        %p287 = scmp.lt.s32.totalorder %s31, 1
        %s288 = scalar_select %p287, %s31, 1
        %s289 = smul.addr %s288, 2
        %s290 = smul.addr %s289, 8
        %s291 = scalar_lea.vmem %s0, %s290
        %p292 = pneg %p60
        %p293 = pneg %p57
        %s294 = sand.u32 %s75, 1
        %s295 = scalar_lea.sflag [#allocation4], %s294
        %s296 = sand.u32 %s75, 1
        %s297 = smul.addr %s296, 16
        %s298 = scalar_lea.vmem [#allocation3], %s297
        %p299 = pneg %p88
        %p300 = pneg %p85
        %p301 = pneg %p109
        %p302 = pneg %p106
        %p303 = pneg %p130
        %p304 = pneg %p127
        %p305 = pneg %p158
        %p306 = pneg %p155
        %s307 = sand.u32 %s145, 1
        %s308 = scalar_lea.sflag [#allocation5], %s307
        %s309 = sand.u32 %s145, 1
        %s310 = smul.addr %s309, 8
        %s311 = scalar_lea.vmem [#allocation6], %s310
        %p312 = pneg %p186
        %p313 = pneg %p183
        %s314 = sand.u32 %s173, 1
        %s315 = scalar_lea.sflag [#allocation8], %s314
        %s316 = sand.u32 %s173, 1
        %s317 = smul.addr %s316, 8
        %s318 = scalar_lea.vmem [#allocation7], %s317
        %p319 = pneg %p214
        %p320 = pneg %p211
        %s321 = sadd.s32 %s31, %s32
        %p322 = scmp.lt.s32.totalorder %s321, 1
        %s323 = scalar_select %p322, %s321, 1
        %s324 = scalar_lea.vmem %s6, %s323
        %p325 = scmp.lt.s32.totalorder %s31, 1
        %s326 = scalar_select %p325, %s31, 1
        %s327 = smul.addr %s326, 2
        %s328 = smul.addr %s327, 8
        %s329 = scalar_lea.vmem %s0, %s328
        %s330 = sadd.s32 %s31, %s32
        %s331 = sadd.s32 %s31, %s32
        %s332 = sadd.s32 %s31, %s32
        %s333 = sadd.s32 %s31, %s32
        %p334 = scmp.lt.s32.totalorder %s333, 1
        %s335 = scalar_select %p334, %s333, 1
        %s336 = scalar_lea.vmem %s6, %s335
        %s337 = sadd.s32 %s31, %s32
        %p338 = scmp.eq.s32.totalorder %s32, 0
        // Predicated region
        $region41: #{tpu_custom_call.1} parent=35 // pred_check
          %p339 = pneg %p338
        $region42: #{tpu_custom_call.1} parent=35 // pred_check_branch
          %341 = sbr.rel (%p339) target = $region44
        $region43: #{tpu_custom_call.1} parent=35 // pred_region
          %v342 = vld [vmem:[%s329] sm:$0xff]
          %v343 = vld [vmem:[%s329 + $0x8] sm:$0xff]
          %v344 = vld [vmem:[%s2] sm:$0xff]
          %v345 = vld [vmem:[%s2 + $0x8] sm:$0xff]
          %v346 = vld [vmem:[%s2 + $0x10] sm:$0xff]
          %v347 = vld [vmem:[%s2 + $0x18] sm:$0xff]
          %vm348 = vcmask 261120
          %v350 = vsel %vm348, %v342, 0
          %v353 = vsel %vm348, %v343, 0
          %355 = vmatpush.msra.mxu0 0.0
          %356 = vmatpush.msra.mxu0 0.0
          %357 = vmatpush.msra.mxu0 0.0
          %358 = vmatpush.msra.mxu0 0.0
          %359 = vmatpush.msra.mxu0 0.0
          %360 = vmatpush.msra.mxu0 0.0
          %361 = vmatpush.msra.mxu0 0.0
          %362 = vmatpush.msra.mxu0 0.0
          %363 = vmatpush.msra.mxu0 0.0
          %364 = vmatpush.msra.mxu0 0.0
          %365 = vmatpush.msra.mxu0 0.0
          %366 = vmatpush.msra.mxu0 0.0
          %367 = vmatpush.msra.mxu0 %v347
          %368 = vmatpush.msra.mxu0 %v346
          %369 = vmatpush.msra.mxu0 %v345
          %370 = vmatpush.msra.mxu0 %v344
          %371 = vmatmul.f32.gmra.mxu0 %v350
          %v372 = vpop.f32.mrf.mxu0
          %v373 = vadd.f32 0.0, %v372
          %374 = vmatmul.f32.gmra.mxu0 %v353
          %v375 = vpop.f32.mrf.mxu0
          %v376 = vadd.f32 0.0, %v375
          %377 = vdwg.mxu0
          %vm378 = vcmask 64512
          %379 = vst.msk [vmem:[#allocation2] sm:$0xff] %vm378, %v373
          %380 = vst.msk [vmem:[#allocation2 + $0x8] sm:$0xff] %vm378, %v376
        $region44: #{tpu_custom_call.1} parent=35 // pred_fallthru
          _
        %v381 = vld [vmem:[%s281] sm:$0xff]
        %v382 = vld [vmem:[%s281 + $0x8] sm:$0xff]
        %s383 = smul.u32 %s32, 16
        %s384 = scalar_lea.vmem %s329, %s383
        %v385 = vld [vmem:[%s384] sm:$0xff]
        %v386 = vld [vmem:[%s384 + $0x8] sm:$0xff]
        %s387 = scalar_lea.vmem [#allocation2], %s383
        %v388 = vld [vmem:[%s387] sm:$0xff]
        %v389 = vld [vmem:[%s387 + $0x8] sm:$0xff]
        %v390 = vld [vmem:[%s3] sm:$0x1]
        %v392 = vperm.slane %v390, 0
        %vm394 = vcmask 130048
        %v396 = vsel %vm394, %v381, 0
        %v399 = vsel %vm394, %v382, 0
        %401 = vmatpush.msra.mxu0 0.0
        %402 = vmatpush.msra.mxu0 0.0
        %403 = vmatpush.msra.mxu0 0.0
        %404 = vmatpush.msra.mxu0 0.0
        %405 = vmatpush.msra.mxu0 0.0
        %406 = vmatpush.msra.mxu0 0.0
        %407 = vmatpush.msra.mxu0 0.0
        %408 = vmatpush.msra.mxu0 0.0
        %409 = vmatpush.msra.mxu0 0.0
        %410 = vmatpush.msra.mxu0 0.0
        %411 = vmatpush.msra.mxu0 0.0
        %412 = vmatpush.msra.mxu0 0.0
        %413 = vmatpush.msra.mxu0 0.0
        %414 = vmatpush.msra.mxu0 0.0
        %415 = vmatpush.msra.mxu0 %v389
        %416 = vmatpush.msra.mxu0 %v388
        %417 = vmatmul.f32.gmra.mxu0 %v396
        %v418 = vpop.f32.mrf.mxu0
        %v419 = vadd.f32 %v392, %v418
        %420 = vmatmul.f32.gmra.mxu0 %v399
        %v421 = vpop.f32.mrf.mxu0
        %v422 = vadd.f32 %v392, %v421
        %423 = vdwg.mxu0
        %vm424 = vcmask 64512
        %v425 = vsel %vm424, %v419, -inf
        %426 = vmax.xlane.f32.xlu0 %v425
        %v427 = vpop.xlane.xlu0 %426
        %v428 = vsel %vm424, %v422, -inf
        %429 = vmax.xlane.f32.xlu0 %v428
        %v430 = vpop.xlane.xlu0 %429
        %v431 = vsub.f32 %v419, %v427
        %v432 = vsub.f32 %v422, %v430
        %v433 = vmul.f32 %v431, 1.442695
        %v434 = vpow.pop %v433
        %v435 = vmul.f32 %v432, 1.442695
        %v436 = vpow.pop %v435
        %v437 = vsel %vm424, %v434, 0.0
        %438 = vadd.xlane.f32.xlu0 %v437
        %v439 = vpop.xlane.xlu0 %438
        %v440 = vsel %vm424, %v436, 0.0
        %441 = vadd.xlane.f32.xlu0 %v440
        %v442 = vpop.xlane.xlu0 %441
        %v443 = vrcp.pop %v439
        %v444 = vrcp.pop %v442
        %v445 = vmul.f32 %v439, %v443
        %v446 = vmul.f32 %v442, %v444
        %v447 = vsub.f32 2.0, %v445
        %v448 = vsub.f32 2.0, %v446
        %v449 = vmul.f32 %v443, %v447
        %v450 = vmul.f32 %v444, %v448
        %v451 = vmul.f32 %v434, %v449
        %v452 = vmul.f32 %v436, %v450
        %453 = vxpose.xlu0.b32.start [1/16] %v451, 128
        %454 = vxpose.xlu0.b32.cont [2/16] %v452, 128
        %455 = vxpose.xlu0.b32.cont [3/16] 0.0, 128
        %456 = vxpose.xlu0.b32.cont [4/16] 0.0, 128
        %457 = vxpose.xlu0.b32.cont [5/16] 0.0, 128
        %458 = vxpose.xlu0.b32.cont [6/16] 0.0, 128
        %459 = vxpose.xlu0.b32.cont [7/16] 0.0, 128
        %460 = vxpose.xlu0.b32.cont [8/16] 0.0, 128
        %461 = vxpose.xlu0.b32.cont [9/16] 0.0, 128
        %462 = vxpose.xlu0.b32.cont [10/16] 0.0, 128
        %463 = vxpose.xlu0.b32.cont [11/16] 0.0, 128
        %464 = vxpose.xlu0.b32.cont [12/16] 0.0, 128
        %465 = vxpose.xlu0.b32.cont [13/16] 0.0, 128
        %466 = vxpose.xlu0.b32.cont [14/16] 0.0, 128
        %467 = vxpose.xlu0.b32.cont [15/16] 0.0, 128
        %468 = vxpose.xlu0.b32.end [16/16] 0.0, 128
        %v469 = vpop.trf.xlu0
        %v470 = vpop.trf.xlu0
        %v471 = vpop.trf.xlu0
        %v472 = vpop.trf.xlu0
        %v473 = vpop.trf.xlu0
        %v474 = vpop.trf.xlu0
        %v475 = vpop.trf.xlu0
        %v476 = vpop.trf.xlu0
        %v477 = vpop.trf.xlu0
        %v478 = vpop.trf.xlu0
        %v479 = vpop.trf.xlu0
        %v480 = vpop.trf.xlu0
        %v481 = vpop.trf.xlu0
        %v482 = vpop.trf.xlu0
        %v483 = vpop.trf.xlu0
        %v484 = vpop.trf.xlu0
        %v486 = vsel %vm394, %v469, 0
        %488 = vmatpush.msra.mxu0 0.0
        %489 = vmatpush.msra.mxu0 0.0
        %490 = vmatpush.msra.mxu0 0.0
        %491 = vmatpush.msra.mxu0 0.0
        %492 = vmatpush.msra.mxu0 0.0
        %493 = vmatpush.msra.mxu0 0.0
        %494 = vmatpush.msra.mxu0 0.0
        %495 = vmatpush.msra.mxu0 0.0
        %496 = vmatpush.msra.mxu0 0.0
        %497 = vmatpush.msra.mxu0 0.0
        %498 = vmatpush.msra.mxu0 0.0
        %499 = vmatpush.msra.mxu0 0.0
        %500 = vmatpush.msra.mxu0 0.0
        %501 = vmatpush.msra.mxu0 0.0
        %502 = vmatpush.msra.mxu0 %v386
        %503 = vmatpush.msra.mxu0 %v385
        %504 = vmatmul.f32.gmra.mxu0 %v486
        %v505 = vpop.f32.mrf.mxu0
        %v506 = vadd.f32 0.0, %v505
        %507 = vdwg.mxu0
        %vm508 = vcmask 261120
        %509 = vst.msk [vmem:[%s311] sm:$0xff] %vm508, %v506
        %510 = vmatpush.msra.mxu0 0.0
        %511 = vmatpush.msra.mxu0 0.0
        %512 = vmatpush.msra.mxu0 0.0
        %513 = vmatpush.msra.mxu0 0.0
        %514 = vmatpush.msra.mxu0 0.0
        %515 = vmatpush.msra.mxu0 0.0
        %516 = vmatpush.msra.mxu0 0.0
        %517 = vmatpush.msra.mxu0 0.0
        %518 = vmatpush.msra.mxu0 0.0
        %519 = vmatpush.msra.mxu0 0.0
        %520 = vmatpush.msra.mxu0 0.0
        %521 = vmatpush.msra.mxu0 0.0
        %522 = vmatpush.msra.mxu0 0.0
        %523 = vmatpush.msra.mxu0 0.0
        %524 = vmatpush.msra.mxu0 %v452
        %525 = vmatpush.msra.mxu0 %v451
        %526 = vmatmul.f32.gmra.mxu0 %v396
        %v527 = vpop.f32.mrf.mxu0
        %v528 = vadd.f32 0.0, %v527
        %529 = vmatmul.f32.gmra.mxu0 %v399
        %v530 = vpop.f32.mrf.mxu0
        %v531 = vadd.f32 0.0, %v530
        %532 = vdwg.mxu0
        %533 = vmatpush.msra.mxu0 0.0
        %534 = vmatpush.msra.mxu0 0.0
        %535 = vmatpush.msra.mxu0 0.0
        %536 = vmatpush.msra.mxu0 0.0
        %537 = vmatpush.msra.mxu0 0.0
        %538 = vmatpush.msra.mxu0 0.0
        %539 = vmatpush.msra.mxu0 0.0
        %540 = vmatpush.msra.mxu0 0.0
        %541 = vmatpush.msra.mxu0 0.0
        %542 = vmatpush.msra.mxu0 0.0
        %543 = vmatpush.msra.mxu0 0.0
        %544 = vmatpush.msra.mxu0 0.0
        %545 = vmatpush.msra.mxu0 0.0
        %546 = vmatpush.msra.mxu0 0.0
        %547 = vmatpush.msra.mxu0 %v531
        %548 = vmatpush.msra.mxu0 %v528
        %549 = vmatmul.f32.gmra.mxu0 %v486
        %v550 = vpop.f32.mrf.mxu0
        %v551 = vadd.f32 0.0, %v550
        %552 = vdwg.mxu0
        %553 = vst.msk [vmem:[%s318] sm:$0xff] %vm424, %v551
        %554 = vmatpush.msra.mxu0 0.0
        %555 = vmatpush.msra.mxu0 0.0
        %556 = vmatpush.msra.mxu0 0.0
        %557 = vmatpush.msra.mxu0 0.0
        %558 = vmatpush.msra.mxu0 0.0
        %559 = vmatpush.msra.mxu0 0.0
        %560 = vmatpush.msra.mxu0 0.0
        %561 = vmatpush.msra.mxu0 0.0
        %562 = vmatpush.msra.mxu0 0.0
        %563 = vmatpush.msra.mxu0 0.0
        %564 = vmatpush.msra.mxu0 0.0
        %565 = vmatpush.msra.mxu0 0.0
        %566 = vmatpush.msra.mxu0 0.0
        %567 = vmatpush.msra.mxu0 0.0
        %568 = vmatpush.msra.mxu0 %v452
        %569 = vmatpush.msra.mxu0 %v451
        %570 = vmatmul.f32.gmra.mxu0 %v486
        %v571 = vpop.f32.mrf.mxu0
        %v572 = vadd.f32 0.0, %v571
        %573 = vdwg.mxu0
        %v574 = vmul.f32 %v381, %v381
        %v575 = vmul.f32 %v382, %v382
        %v576 = vsel %vm394, %v574, 0.0
        %v577 = vsel %vm394, %v575, 0.0
        %v578 = vadd.f32 %v576, %v577
        %579 = vadd.xlane.f32.xlu0 %v578
        %v580 = vpop.xlane.xlu0 %579
        %v581 = vrot.slane %v580, 4
        %v582 = vadd.f32 %v580, %v581
        %v583 = vrot.slane %v582, 2
        %v584 = vadd.f32 %v582, %v583
        %v585 = vrot.slane %v584, 1
        %v586 = vadd.f32 %v584, %v585
        %s587 = vtos %v586
        %v588 = vmul.f32 %v451, %v528
        %v589 = vmul.f32 %v452, %v531
        %v590 = vsel %vm424, %v588, 0.0
        %v591 = vsel %vm424, %v589, 0.0
        %v592 = vadd.f32 %v590, %v591
        %593 = vadd.xlane.f32.xlu0 %v592
        %v594 = vpop.xlane.xlu0 %593
        %v595 = vrot.slane %v594, 4
        %v596 = vadd.f32 %v594, %v595
        %v597 = vrot.slane %v596, 2
        %v598 = vadd.f32 %v596, %v597
        %v599 = vrot.slane %v598, 1
        %v600 = vadd.f32 %v598, %v599
        %s601 = vtos %v600
        %s602 = smul.f32 %s601, 2.0
        %s603 = ssub.f32 %s587, %s602
        %v604 = vmul.f32 %v572, %v572
        %v605 = vsel %vm424, %v604, 0.0
        %606 = vadd.xlane.f32.xlu0 %v605
        %v607 = vpop.xlane.xlu0 %606
        %v608 = vrot.slane %v607, 4
        %v609 = vadd.f32 %v607, %v608
        %v610 = vrot.slane %v609, 2
        %v611 = vadd.f32 %v609, %v610
        %v612 = vrot.slane %v611, 1
        %v613 = vadd.f32 %v611, %v612
        %s614 = vtos %v613
        %s615 = sadd.f32 %s603, %s614
        %v616 = vstv %s615
        %vm617 = vcmask 0
        %618 = vst.msk [vmem:[%s336] sm:$0x1] %vm617, %v616
        %s619 = sand.u32 %s145, 1
        %s620 = scalar_lea.sflag [#allocation5], %s619
        %s621 = sand.u32 %s145, 1
        %s622 = smul.addr %s621, 8
        %s623 = scalar_lea.vmem [#allocation6], %s622
        %s624 = sand.u32 %s173, 1
        %s625 = scalar_lea.sflag [#allocation8], %s624
        %s626 = sand.u32 %s173, 1
        %s627 = smul.addr %s626, 8
        %s628 = scalar_lea.vmem [#allocation7], %s627
        %s629 = sadd.s32 %s31, %s32
        %p630 = scmp.lt.s32.totalorder %s629, 1
        %s631 = scalar_select %p630, %s629, 1
        %s632 = scalar_lea.vmem %s6, %s631
        // Predicated region
        $region45: #{tpu_custom_call.1} parent=35 // pred_check
          %p633 = pneg %p155
        $region46: #{tpu_custom_call.1} parent=35 // pred_check_branch
          %635 = sbr.rel (%p633) target = $region48
        $region47: #{tpu_custom_call.1} parent=35 // pred_region
          %s636 = sadd.s32 %s31, %s32
          %638 = vsyncadd %s620, 0
          %s639 = smul.addr %s636, 8
          %s640 = scalar_lea.hbm %s4, %s639
          %s642 = sshll.u32 %s623, 4
          %s643 = int_to_ptr.vmem [resolvable:$true] %s642
          %s644 = sshll.u32 %s640, 4
          %s645 = int_to_ptr.hbm [resolvable:$true] %s644
          %647 = dma.vmem_to_hbm [thread:$0]  %s643, 128, %s645, %s620
        $region48: #{tpu_custom_call.1} parent=35 // pred_fallthru
          _
        // Predicated region
        $region49: #{tpu_custom_call.1} parent=35 // pred_check
          %p648 = pneg %p183
        $region50: #{tpu_custom_call.1} parent=35 // pred_check_branch
          %650 = sbr.rel (%p648) target = $region52
        $region51: #{tpu_custom_call.1} parent=35 // pred_region
          %s651 = sadd.s32 %s31, %s32
          %653 = vsyncadd %s625, 0
          %s654 = smul.addr %s651, 8
          %s655 = scalar_lea.hbm %s5, %s654
          %s657 = sshll.u32 %s628, 4
          %s658 = int_to_ptr.vmem [resolvable:$true] %s657
          %s659 = sshll.u32 %s655, 4
          %s660 = int_to_ptr.hbm [resolvable:$true] %s659
          %662 = dma.vmem_to_hbm [thread:$0]  %s658, 128, %s660, %s625
        $region52: #{tpu_custom_call.1} parent=35 // pred_fallthru
          _
        // Predicated region
        $region53: #{tpu_custom_call.1} parent=35 // pred_check
          %p663 = pneg %p211
        $region54: #{tpu_custom_call.1} parent=35 // pred_check_branch
          %665 = sbr.rel (%p663) target = $region56
        $region55: #{tpu_custom_call.1} parent=35 // pred_region
          %s666 = sadd.s32 %s31, %s32
        $region56: #{tpu_custom_call.1} parent=35 // pred_fallthru
          _
      $region36: #{tpu_custom_call.1} parent=5 // pred_fallthru
        _
      %p667 = scmp.le.s32.totalorder 2, %s22
      // Predicated region
      $region57: #{tpu_custom_call.1} parent=5 // pred_check
        %p668 = pneg %p667
      $region58: #{tpu_custom_call.1} parent=5 // pred_check_branch
        %670 = sbr.rel (%p668) target = $region60
      $region59: #{tpu_custom_call.1} parent=5 // pred_region
        %s671 = ssub.s32 %s22, 2
        // Predicated region
        $region61: #{tpu_custom_call.1} parent=59 // pred_check
          %p672 = pneg %p161
        $region62: #{tpu_custom_call.1} parent=59 // pred_check_branch
          %674 = sbr.rel (%p672) target = $region64
        $region63: #{tpu_custom_call.1} parent=59 // pred_region
          %s675 = sand.u32 %s146, 1
          %s676 = scalar_lea.sflag [#allocation5], %s675
          %s677 = sand.u32 %s146, 1
          %s678 = smul.addr %s677, 8
          %s679 = scalar_lea.vmem [#allocation6], %s678
          %681 = dma.done %s676, 128
        $region64: #{tpu_custom_call.1} parent=59 // pred_fallthru
          _
        // Predicated region
        $region65: #{tpu_custom_call.1} parent=59 // pred_check
          %p682 = pneg %p189
        $region66: #{tpu_custom_call.1} parent=59 // pred_check_branch
          %684 = sbr.rel (%p682) target = $region68
        $region67: #{tpu_custom_call.1} parent=59 // pred_region
          %s685 = sand.u32 %s174, 1
          %s686 = scalar_lea.sflag [#allocation8], %s685
          %s687 = sand.u32 %s174, 1
          %s688 = smul.addr %s687, 8
          %s689 = scalar_lea.vmem [#allocation7], %s688
          %691 = dma.done %s686, 128
        $region68: #{tpu_custom_call.1} parent=59 // pred_fallthru
          _
        // Predicated region
        $region69: #{tpu_custom_call.1} parent=59 // pred_check
          %p692 = pneg %p217
        $region70: #{tpu_custom_call.1} parent=59 // pred_check_branch
          %694 = sbr.rel (%p692) target = $region72
        $region71: #{tpu_custom_call.1} parent=59 // pred_region
          %s695 = sadd.s32 %s33, %s34
          %p696 = scmp.lt.s32.totalorder %s695, 1
          %s697 = scalar_select %p696, %s695, 1
          %s698 = scalar_lea.vmem %s6, %s697
        $region72: #{tpu_custom_call.1} parent=59 // pred_fallthru
          _
      $region60: #{tpu_custom_call.1} parent=5 // pred_fallthru
        _
    $region6: #{tpu_custom_call.1} parent=1 // loop_footer
      %s26 = sadd.s32 1, %s22
    $region7: #{tpu_custom_call.1} parent=1 // loop_footer_branch
      %21 = sbr.rel target = $region3
    $region8: #{tpu_custom_call.1} parent=1 // loop_exit
      _
    %699 = vsyncpa [#allocation4], 1
    %s700 = scalar_lea.sflag [#allocation4], 1
    %701 = vsyncpa %s700, 1
    %702 = vsyncpa [#allocation5], 1
    %s703 = scalar_lea.sflag [#allocation5], 1
    %704 = vsyncpa %s703, 1
    %705 = vsyncpa [#allocation8], 1
    %s706 = scalar_lea.sflag [#allocation8], 1
    %707 = vsyncpa %s706, 1

</llo_original>
